<compile_context>
chip_gen: v5e
topology: v5e:2x2
jax: 0.10.0
libtpu: 0.0.40
codegen_flags: <defaults>
</compile_context>

<pallas_src>
import math

import jax
import jax.numpy as jnp
from jax import lax
from jax.experimental import pallas as pl
from jax.experimental.pallas import tpu as pltpu

_LANE = 128       # lane width (last-dim alignment)
_SUBLANE = 8      # f32 sublane count (batch-tile alignment)
_MIB = 1024 * 1024
_MAX_UNROLLED_HIDDEN = 4   # static unroll up to this many hidden layers


def _round_up(n, m):
    return ((n + m - 1) // m) * m


def _cdiv(a, b):
    return (a + b - 1) // b


# --------------------------------------------------------------------------
# Kernel
# --------------------------------------------------------------------------
def _mlp_kernel(x_ref, w_in_ref, b_in_ref, w_h_ref, b_h_ref,
                w_out_ref, b_out_ref, o_ref):
    # Input layer + ReLU. Activations may arrive as f32 or bf16; the bf16
    # cast happens here so the wrapper never needs a separate cast pass.
    x = x_ref[...].astype(jnp.bfloat16)
    h = jnp.dot(x, w_in_ref[...],
                preferred_element_type=jnp.float32) + b_in_ref[...]
    h = jnp.maximum(h, 0.0)

    def layer(h, w, b):
        y = jnp.dot(h.astype(jnp.bfloat16), w,
                    preferred_element_type=jnp.float32) + b
        return jnp.maximum(y, 0.0)

    num_hidden = w_h_ref.shape[0]
    if num_hidden <= _MAX_UNROLLED_HIDDEN:
        # Small stacks: static unroll gives the LLO scheduler full visibility.
        for l in range(num_hidden):
            h = layer(h, w_h_ref[l], b_h_ref[l])
    else:
        # Deep stacks: fori_loop with dynamic layer index bounds code size
        # and vreg live ranges (no per-layer unrolled copies).
        def body(l, h):
            return layer(h, w_h_ref[l], b_h_ref[l])
        h = lax.fori_loop(0, num_hidden, body, h)

    # Output layer (no activation); lane-dense padded output slab.
    out = jnp.dot(h.astype(jnp.bfloat16), w_out_ref[...],
                  preferred_element_type=jnp.float32) + b_out_ref[...]
    o_ref[...] = out.astype(o_ref.dtype)


# --------------------------------------------------------------------------
# pallas_call wrapper
# --------------------------------------------------------------------------
def _vmem_limit_bytes():
    # Generation-aware scoped-VMEM budget: ~3/4 of physical VMEM.
    #   v5e/v6e: 128 MiB -> 96 MiB;  v7x: 64 MiB -> 48 MiB.
    cap = 64 * _MIB
    try:
        info = pltpu.get_tpu_info()
        cap = int(getattr(info, "vmem_capacity_bytes", cap))
    except Exception:
        pass
    return max(32 * _MIB, (cap * 3) // 4)


def _call_mlp(x_in, w_in, b_in, w_h, b_h, w_out, b_out,
              tile_b, n_steps, out_p_dim, single_buffer_weights):
    def const_spec(shape):
        # Whole-array block, same block at every grid step (fetched once).
        idx = lambda i, _shape=shape: tuple(0 for _ in _shape)
        if single_buffer_weights:
            try:
                # Single-buffer grid-invariant operands: halves their VMEM
                # footprint vs. the default 2-deep pipeline.
                return pl.BlockSpec(shape, idx, pipeline_mode=pl.Buffered(1))
            except (AttributeError, TypeError):
                pass
        return pl.BlockSpec(shape, idx)

    B_P = tile_b * n_steps
    return pl.pallas_call(
        _mlp_kernel,
        out_shape=jax.ShapeDtypeStruct((B_P, out_p_dim), jnp.float32),
        grid=(n_steps,),
        in_specs=[
            pl.BlockSpec((tile_b, x_in.shape[1]), lambda i: (i, 0)),  # x tile
            const_spec(w_in.shape), const_spec(b_in.shape),   # input layer
            const_spec(w_h.shape), const_spec(b_h.shape),     # hidden stack
            const_spec(w_out.shape), const_spec(b_out.shape), # output layer
        ],
        out_specs=pl.BlockSpec((tile_b, out_p_dim), lambda i: (i, 0)),
        compiler_params=pltpu.CompilerParams(
            dimension_semantics=("parallel",),          # megacore-shard batch
            vmem_limit_bytes=_vmem_limit_bytes()),
    )(x_in, w_in, b_in, w_h, b_h, w_out, b_out)


def mlp_forward(x, params, *, tile_b=512):
    """x: [B, INPUT_DIM] float32. params: dict from init_params (padded)."""
    w_in, b_in = params["w_in"], params["b_in"]
    w_h, b_h = params["w_h"], params["b_h"]
    w_out, b_out = params["w_out"], params["b_out"]
    in_dim = params["input_dim"]
    out_dim = params["output_dim"]

    B = x.shape[0]
    IN_P = w_in.shape[0]
    OUT_P = w_out.shape[1]

    # ---- batch tiling: minimize padding waste (<= 7 rows per step) and keep
    # >= 2 grid steps when the batch allows so both v7x TensorCores get work
    # (per-step overhead ~0.35 us, so this is near-free on 1-TC chips).
    tile_b_max = max(_SUBLANE, _round_up(min(tile_b, max(B, 1)), _SUBLANE))
    n_steps = max(1, _cdiv(B, tile_b_max))
    if n_steps == 1 and B >= 2 * _SUBLANE:
        n_steps = 2
    tb = _round_up(_cdiv(B, n_steps), _SUBLANE)
    B_P = tb * n_steps

    # ---- input prep: avoid the wrapper-side pad/cast pass entirely when x
    # is already aligned (stream f32 straight in; kernel casts to bf16).
    if B_P == B and IN_P == in_dim:
        x_in = x
    else:
        # Pad pass unavoidable; do it in bf16 so the extra pass moves half
        # the bytes (padded rows/cols stay exactly zero -> semantics kept).
        x_in = jnp.zeros((B_P, IN_P), jnp.bfloat16)
        x_in = x_in.at[:B, :in_dim].set(x.astype(jnp.bfloat16))

    try:
        out_p = _call_mlp(x_in, w_in, b_in, w_h, b_h, w_out, b_out,
                          tb, n_steps, OUT_P, single_buffer_weights=True)
    except Exception:
        # Fallback if this JAX/Mosaic build rejects pipeline_mode=Buffered(1).
        out_p = _call_mlp(x_in, w_in, b_in, w_h, b_h, w_out, b_out,
                          tb, n_steps, OUT_P, single_buffer_weights=False)

    if B_P == B and OUT_P == out_dim:
        return out_p            # no extra slice pass when nothing was padded
    return out_p[:B, :out_dim]


# --------------------------------------------------------------------------
# Parameter init (nn.Linear-style), zero-padded to 128-lane multiples.
# Weights stored bf16 (MXU dtype), biases f32.
# --------------------------------------------------------------------------
def init_params(key, input_dim, hidden_dim, output_dim, hidden_layers_num):
    in_p = _round_up(input_dim, _LANE)
    hid_p = _round_up(hidden_dim, _LANE)
    out_p = _round_up(output_dim, _LANE)

    def linear(k, fan_in, fan_out, fan_in_p, fan_out_p):
        kw, kb = jax.random.split(k)
        bound = 1.0 / math.sqrt(fan_in)
        w = jax.random.uniform(kw, (fan_in, fan_out), jnp.float32, -bound, bound)
        b = jax.random.uniform(kb, (1, fan_out), jnp.float32, -bound, bound)
        w_p = jnp.zeros((fan_in_p, fan_out_p), jnp.float32)
        w_p = w_p.at[:fan_in, :fan_out].set(w)
        b_p = jnp.zeros((1, fan_out_p), jnp.float32).at[:, :fan_out].set(b)
        return w_p.astype(jnp.bfloat16), b_p

    keys = jax.random.split(key, 2 + hidden_layers_num)
    w_in, b_in = linear(keys[0], input_dim, hidden_dim, in_p, hid_p)

    w_h_list, b_h_list = [], []
    for i in range(hidden_layers_num):
        w, b = linear(keys[1 + i], hidden_dim, hidden_dim, hid_p, hid_p)
        w_h_list.append(w)
        b_h_list.append(b)
    w_h = jnp.stack(w_h_list)                     # [L, Hp, Hp] bf16
    b_h = jnp.stack(b_h_list)                     # [L, 1, Hp]  f32

    w_out, b_out = linear(keys[-1], hidden_dim, output_dim, hid_p, out_p)
    return {"w_in": w_in, "b_in": b_in,
            "w_h": w_h, "b_h": b_h,
            "w_out": w_out, "b_out": b_out,
            "input_dim": input_dim, "output_dim": output_dim}


# --------------------------------------------------------------------------
# References
# --------------------------------------------------------------------------
def mlp_reference_bf16(x, params):
    """Pure-JAX reference matching the kernel numerics (bf16 matmul, f32 acc)."""
    def dot(a, w):
        return jnp.dot(a.astype(jnp.bfloat16), w,
                       preferred_element_type=jnp.float32)

    B = x.shape[0]
    IN_P = params["w_in"].shape[0]
    x_p = jnp.zeros((B, IN_P), jnp.float32).at[:, :params["input_dim"]].set(x)
    h = jnp.maximum(dot(x_p, params["w_in"]) + params["b_in"], 0.0)
    for l in range(params["w_h"].shape[0]):
        h = jnp.maximum(dot(h, params["w_h"][l]) + params["b_h"][l], 0.0)
    out = dot(h, params["w_out"]) + params["b_out"]
    return out[:, :params["output_dim"]]


def mlp_reference_f32(x, params):
    """Original-module semantics (all-f32 math with the bf16-rounded weights)."""
    # NOTE: bf16 matmul operands in the kernel deviate from the f32 PyTorch
    # module; this check uses a loose tolerance, compounding with depth.
    B = x.shape[0]
    IN_P = params["w_in"].shape[0]
    x_p = jnp.zeros((B, IN_P), jnp.float32).at[:, :params["input_dim"]].set(x)
    h = jnp.maximum(x_p @ params["w_in"].astype(jnp.float32) + params["b_in"], 0.0)
    for l in range(params["w_h"].shape[0]):
        h = jnp.maximum(h @ params["w_h"][l].astype(jnp.float32)
                        + params["b_h"][l], 0.0)
    out = h @ params["w_out"].astype(jnp.float32) + params["b_out"]
    return out[:, :params["output_dim"]]


# --------------------------------------------------------------------------
# Tests
# --------------------------------------------------------------------------
def _run_case(key, B, in_dim, hid_dim, out_dim, L, f32_tol):
    kx, kp = jax.random.split(key)
    x = jax.random.normal(kx, (B, in_dim), jnp.float32)
    params = init_params(kp, in_dim, hid_dim, out_dim, L)

    out = jax.block_until_ready(mlp_forward(x, params))
    assert out.shape == (B, out_dim), (out.shape, (B, out_dim))

    ref_bf16 = mlp_reference_bf16(x, params)
    ref_f32 = mlp_reference_f32(x, params)
    assert jnp.allclose(out, ref_bf16, atol=2e-3, rtol=2e-3), \
        f"mismatch vs bf16-matched reference (B={B}, L={L})"
    assert jnp.allclose(out, ref_f32, atol=f32_tol, rtol=f32_tol), \
        f"mismatch vs f32 module semantics (B={B}, L={L})"


if __name__ == "__main__":
    key = jax.random.PRNGKey(0)
    k1, k2, k3 = jax.random.split(key, 3)

    # 1) Small shapes consistent with the module's forward (single grid step,
    #    padded dims, statically-unrolled hidden path).
    _run_case(k1, B=8, in_dim=32, hid_dim=32, out_dim=16, L=1, f32_tol=5e-2)

    # 2) Non-multiple-of-8 batch, multi-step grid, deep stack -> fori_loop
    #    hidden path and batch padding path.
    _run_case(k2, B=19, in_dim=48, hid_dim=96, out_dim=10, L=5, f32_tol=1.5e-1)

    # 3) Fully aligned case: f32 input streamed straight into the kernel
    #    (no wrapper pad/cast pass), no output slice pass, 2 grid steps.
    _run_case(k3, B=16, in_dim=128, hid_dim=64, out_dim=128, L=2, f32_tol=1e-1)

    print("KERNEL_OK")
</pallas_src>

<mosaic_0001>
module attributes {stable_mosaic.version = 11 : i64} {
  func.func @_mlp_kernel(%arg0: i32, %arg1: memref<8x128xbf16, #tpu.memory_space<vmem>>, %arg2: memref<128x128xbf16, #tpu.memory_space<vmem>>, %arg3: memref<1x128xf32, #tpu.memory_space<vmem>>, %arg4: memref<1x128x128xbf16, #tpu.memory_space<vmem>>, %arg5: memref<1x1x128xf32, #tpu.memory_space<vmem>>, %arg6: memref<128x128xbf16, #tpu.memory_space<vmem>>, %arg7: memref<1x128xf32, #tpu.memory_space<vmem>>, %arg8: memref<8x128xf32, #tpu.memory_space<vmem>>) attributes {dimension_semantics = [#tpu.dimension_semantics<parallel>], iteration_bounds = array<i64: 1>, scalar_prefetch = 0 : i64, scratch_operands = 0 : i64, tpu.core_type = #tpu.core_type<tc>, window_params = [{transform_indices = @transform_0, window_bounds = array<i64: 8, 128>}, {pipeline_mode = #tpu.pipeline_mode<synchronous>, transform_indices = @transform_1, window_bounds = array<i64: 128, 128>}, {pipeline_mode = #tpu.pipeline_mode<synchronous>, transform_indices = @transform_2, window_bounds = array<i64: 1, 128>}, {pipeline_mode = #tpu.pipeline_mode<synchronous>, transform_indices = @transform_3, window_bounds = array<i64: 1, 128, 128>}, {pipeline_mode = #tpu.pipeline_mode<synchronous>, transform_indices = @transform_4, window_bounds = array<i64: 1, 1, 128>}, {pipeline_mode = #tpu.pipeline_mode<synchronous>, transform_indices = @transform_5, window_bounds = array<i64: 128, 128>}, {pipeline_mode = #tpu.pipeline_mode<synchronous>, transform_indices = @transform_6, window_bounds = array<i64: 1, 128>}, {transform_indices = @transform_7, window_bounds = array<i64: 8, 128>}]} {
    %c0 = arith.constant 0 : index
    %c0_0 = arith.constant 0 : index
    %0 = vector.load %arg1[%c0, %c0_0] : memref<8x128xbf16, #tpu.memory_space<vmem>>, vector<8x128xbf16>
    %c0_1 = arith.constant 0 : index
    %c0_2 = arith.constant 0 : index
    %1 = vector.load %arg2[%c0_1, %c0_2] : memref<128x128xbf16, #tpu.memory_space<vmem>>, vector<128x128xbf16>
    %cst = arith.constant dense<0.000000e+00> : vector<8x128xf32>
    %2 = tpu.matmul %0, %1, %cst {dimension_numbers = #tpu.dot_dimension_numbers<[1], [0], [0], [1], [0, 0, 1, 1], [], []>} : vector<8x128xbf16>, vector<128x128xbf16>, vector<8x128xf32> -> vector<8x128xf32>
    %c0_3 = arith.constant 0 : index
    %c0_4 = arith.constant 0 : index
    %3 = vector.load %arg3[%c0_3, %c0_4] : memref<1x128xf32, #tpu.memory_space<vmem>>, vector<1x128xf32>
    %4 = vector.broadcast %3 : vector<1x128xf32> to vector<8x128xf32>
    %5 = arith.addf %2, %4 : vector<8x128xf32>
    %cst_5 = arith.constant 0.000000e+00 : f32
    %6 = vector.broadcast %cst_5 : f32 to vector<8x128xf32>
    %7 = arith.maximumf %5, %6 : vector<8x128xf32>
    %c0_6 = arith.constant 0 : index
    %c0_7 = arith.constant 0 : index
    %c0_8 = arith.constant 0 : index
    %8 = vector.load %arg4[%c0_6, %c0_7, %c0_8] : memref<1x128x128xbf16, #tpu.memory_space<vmem>>, vector<1x128x128xbf16>
    %9 = vector.shape_cast %8 : vector<1x128x128xbf16> to vector<128x128xbf16>
    %c0_9 = arith.constant 0 : index
    %c0_10 = arith.constant 0 : index
    %c0_11 = arith.constant 0 : index
    %10 = vector.load %arg5[%c0_9, %c0_10, %c0_11] : memref<1x1x128xf32, #tpu.memory_space<vmem>>, vector<1x1x128xf32>
    %11 = vector.shape_cast %10 : vector<1x1x128xf32> to vector<1x128xf32>
    %12 = arith.truncf %7 : vector<8x128xf32> to vector<8x128xbf16>
    %cst_12 = arith.constant dense<0.000000e+00> : vector<8x128xf32>
    %13 = tpu.matmul %12, %9, %cst_12 {dimension_numbers = #tpu.dot_dimension_numbers<[1], [0], [0], [1], [0, 0, 1, 1], [], []>} : vector<8x128xbf16>, vector<128x128xbf16>, vector<8x128xf32> -> vector<8x128xf32>
    %14 = vector.broadcast %11 : vector<1x128xf32> to vector<8x128xf32>
    %15 = arith.addf %13, %14 : vector<8x128xf32>
    %cst_13 = arith.constant 0.000000e+00 : f32
    %16 = vector.broadcast %cst_13 : f32 to vector<8x128xf32>
    %17 = arith.maximumf %15, %16 : vector<8x128xf32>
    %18 = arith.truncf %17 : vector<8x128xf32> to vector<8x128xbf16>
    %c0_14 = arith.constant 0 : index
    %c0_15 = arith.constant 0 : index
    %19 = vector.load %arg6[%c0_14, %c0_15] : memref<128x128xbf16, #tpu.memory_space<vmem>>, vector<128x128xbf16>
    %cst_16 = arith.constant dense<0.000000e+00> : vector<8x128xf32>
    %20 = tpu.matmul %18, %19, %cst_16 {dimension_numbers = #tpu.dot_dimension_numbers<[1], [0], [0], [1], [0, 0, 1, 1], [], []>} : vector<8x128xbf16>, vector<128x128xbf16>, vector<8x128xf32> -> vector<8x128xf32>
    %c0_17 = arith.constant 0 : index
    %c0_18 = arith.constant 0 : index
    %21 = vector.load %arg7[%c0_17, %c0_18] : memref<1x128xf32, #tpu.memory_space<vmem>>, vector<1x128xf32>
    %22 = vector.broadcast %21 : vector<1x128xf32> to vector<8x128xf32>
    %23 = arith.addf %20, %22 : vector<8x128xf32>
    %c0_19 = arith.constant 0 : index
    %c0_20 = arith.constant 0 : index
    %24 = vector.load %arg8[%c0_19, %c0_20] : memref<8x128xf32, #tpu.memory_space<vmem>>, vector<8x128xf32>
    tpu.vector_store %arg8[%c0_19, %c0_20], %23 {strides = array<i32>} : memref<8x128xf32, #tpu.memory_space<vmem>>, vector<8x128xf32>,
    return
  }
  func.func @transform_0(%arg0: i32) -> (i32, i32) {
    %c0_i32 = arith.constant 0 : i32
    %c0_i32_0 = arith.constant 0 : i32
    return %arg0, %c0_i32 : i32, i32
  }
  func.func @transform_1(%arg0: i32) -> (i32, i32) {
    %c0_i32 = arith.constant 0 : i32
    %c0_i32_0 = arith.constant 0 : i32
    %c0_i32_1 = arith.constant 0 : i32
    return %c0_i32, %c0_i32_0 : i32, i32
  }
  func.func @transform_2(%arg0: i32) -> (i32, i32) {
    %c0_i32 = arith.constant 0 : i32
    %c0_i32_0 = arith.constant 0 : i32
    %c0_i32_1 = arith.constant 0 : i32
    return %c0_i32, %c0_i32_0 : i32, i32
  }
  func.func @transform_3(%arg0: i32) -> (i32, i32, i32) {
    %c0_i32 = arith.constant 0 : i32
    %c0_i32_0 = arith.constant 0 : i32
    %c0_i32_1 = arith.constant 0 : i32
    %c0_i32_2 = arith.constant 0 : i32
    return %c0_i32, %c0_i32_0, %c0_i32_1 : i32, i32, i32
  }
  func.func @transform_4(%arg0: i32) -> (i32, i32, i32) {
    %c0_i32 = arith.constant 0 : i32
    %c0_i32_0 = arith.constant 0 : i32
    %c0_i32_1 = arith.constant 0 : i32
    %c0_i32_2 = arith.constant 0 : i32
    return %c0_i32, %c0_i32_0, %c0_i32_1 : i32, i32, i32
  }
  func.func @transform_5(%arg0: i32) -> (i32, i32) {
    %c0_i32 = arith.constant 0 : i32
    %c0_i32_0 = arith.constant 0 : i32
    %c0_i32_1 = arith.constant 0 : i32
    return %c0_i32, %c0_i32_0 : i32, i32
  }
  func.func @transform_6(%arg0: i32) -> (i32, i32) {
    %c0_i32 = arith.constant 0 : i32
    %c0_i32_0 = arith.constant 0 : i32
    %c0_i32_1 = arith.constant 0 : i32
    return %c0_i32, %c0_i32_0 : i32, i32
  }
  func.func @transform_7(%arg0: i32) -> (i32, i32) {
    %c0_i32 = arith.constant 0 : i32
    %c0_i32_0 = arith.constant 0 : i32
    return %arg0, %c0_i32 : i32, i32
  }
}

module attributes {stable_mosaic.version = 11 : i64} {
  func.func @_mlp_kernel(%arg0: i32, %arg1: memref<8x128xbf16, #tpu.memory_space<vmem>>, %arg2: memref<128x128xbf16, #tpu.memory_space<vmem>>, %arg3: memref<1x128xf32, #tpu.memory_space<vmem>>, %arg4: memref<1x128x128xbf16, #tpu.memory_space<vmem>>, %arg5: memref<1x1x128xf32, #tpu.memory_space<vmem>>, %arg6: memref<128x128xbf16, #tpu.memory_space<vmem>>, %arg7: memref<1x128xf32, #tpu.memory_space<vmem>>, %arg8: memref<8x128xf32, #tpu.memory_space<vmem>>) attributes {dimension_semantics = [#tpu.dimension_semantics<parallel>], iteration_bounds = array<i64: 1>, scalar_prefetch = 0 : i64, scratch_operands = 0 : i64, tpu.core_type = #tpu.core_type<tc>, window_params = [{transform_indices = @transform_0, window_bounds = array<i64: 8, 128>}, {pipeline_mode = #tpu.pipeline_mode<synchronous>, transform_indices = @transform_1, window_bounds = array<i64: 128, 128>}, {pipeline_mode = #tpu.pipeline_mode<synchronous>, transform_indices = @transform_2, window_bounds = array<i64: 1, 128>}, {pipeline_mode = #tpu.pipeline_mode<synchronous>, transform_indices = @transform_3, window_bounds = array<i64: 1, 128, 128>}, {pipeline_mode = #tpu.pipeline_mode<synchronous>, transform_indices = @transform_4, window_bounds = array<i64: 1, 1, 128>}, {pipeline_mode = #tpu.pipeline_mode<synchronous>, transform_indices = @transform_5, window_bounds = array<i64: 128, 128>}, {pipeline_mode = #tpu.pipeline_mode<synchronous>, transform_indices = @transform_6, window_bounds = array<i64: 1, 128>}, {transform_indices = @transform_7, window_bounds = array<i64: 8, 128>}]} {
    %c0 = arith.constant 0 : index
    %c0_0 = arith.constant 0 : index
    %0 = vector.load %arg1[%c0, %c0_0] : memref<8x128xbf16, #tpu.memory_space<vmem>>, vector<8x128xbf16>
    %c0_1 = arith.constant 0 : index
    %c0_2 = arith.constant 0 : index
    %1 = vector.load %arg2[%c0_1, %c0_2] : memref<128x128xbf16, #tpu.memory_space<vmem>>, vector<128x128xbf16>
    %cst = arith.constant dense<0.000000e+00> : vector<8x128xf32>
    %2 = tpu.matmul %0, %1, %cst {dimension_numbers = #tpu.dot_dimension_numbers<[1], [0], [0], [1], [0, 0, 1, 1], [], []>} : vector<8x128xbf16>, vector<128x128xbf16>, vector<8x128xf32> -> vector<8x128xf32>
    %c0_3 = arith.constant 0 : index
    %c0_4 = arith.constant 0 : index
    %3 = vector.load %arg3[%c0_3, %c0_4] : memref<1x128xf32, #tpu.memory_space<vmem>>, vector<1x128xf32>
    %4 = vector.broadcast %3 : vector<1x128xf32> to vector<8x128xf32>
    %5 = arith.addf %2, %4 : vector<8x128xf32>
    %cst_5 = arith.constant 0.000000e+00 : f32
    %6 = vector.broadcast %cst_5 : f32 to vector<8x128xf32>
    %7 = arith.maximumf %5, %6 : vector<8x128xf32>
    %c0_6 = arith.constant 0 : index
    %c0_7 = arith.constant 0 : index
    %c0_8 = arith.constant 0 : index
    %8 = vector.load %arg4[%c0_6, %c0_7, %c0_8] : memref<1x128x128xbf16, #tpu.memory_space<vmem>>, vector<1x128x128xbf16>
    %9 = vector.shape_cast %8 : vector<1x128x128xbf16> to vector<128x128xbf16>
    %c0_9 = arith.constant 0 : index
    %c0_10 = arith.constant 0 : index
    %c0_11 = arith.constant 0 : index
    %10 = vector.load %arg5[%c0_9, %c0_10, %c0_11] : memref<1x1x128xf32, #tpu.memory_space<vmem>>, vector<1x1x128xf32>
    %11 = vector.shape_cast %10 : vector<1x1x128xf32> to vector<1x128xf32>
    %12 = arith.truncf %7 : vector<8x128xf32> to vector<8x128xbf16>
    %cst_12 = arith.constant dense<0.000000e+00> : vector<8x128xf32>
    %13 = tpu.matmul %12, %9, %cst_12 {dimension_numbers = #tpu.dot_dimension_numbers<[1], [0], [0], [1], [0, 0, 1, 1], [], []>} : vector<8x128xbf16>, vector<128x128xbf16>, vector<8x128xf32> -> vector<8x128xf32>
    %14 = vector.broadcast %11 : vector<1x128xf32> to vector<8x128xf32>
    %15 = arith.addf %13, %14 : vector<8x128xf32>
    %cst_13 = arith.constant 0.000000e+00 : f32
    %16 = vector.broadcast %cst_13 : f32 to vector<8x128xf32>
    %17 = arith.maximumf %15, %16 : vector<8x128xf32>
    %18 = arith.truncf %17 : vector<8x128xf32> to vector<8x128xbf16>
    %c0_14 = arith.constant 0 : index
    %c0_15 = arith.constant 0 : index
    %19 = vector.load %arg6[%c0_14, %c0_15] : memref<128x128xbf16, #tpu.memory_space<vmem>>, vector<128x128xbf16>
    %cst_16 = arith.constant dense<0.000000e+00> : vector<8x128xf32>
    %20 = tpu.matmul %18, %19, %cst_16 {dimension_numbers = #tpu.dot_dimension_numbers<[1], [0], [0], [1], [0, 0, 1, 1], [], []>} : vector<8x128xbf16>, vector<128x128xbf16>, vector<8x128xf32> -> vector<8x128xf32>
    %c0_17 = arith.constant 0 : index
    %c0_18 = arith.constant 0 : index
    %21 = vector.load %arg7[%c0_17, %c0_18] : memref<1x128xf32, #tpu.memory_space<vmem>>, vector<1x128xf32>
    %22 = vector.broadcast %21 : vector<1x128xf32> to vector<8x128xf32>
    %23 = arith.addf %20, %22 : vector<8x128xf32>
    %c0_19 = arith.constant 0 : index
    %c0_20 = arith.constant 0 : index
    %24 = vector.load %arg8[%c0_19, %c0_20] : memref<8x128xf32, #tpu.memory_space<vmem>>, vector<8x128xf32>
    tpu.vector_store %arg8[%c0_19, %c0_20], %23 {strides = array<i32>} : memref<8x128xf32, #tpu.memory_space<vmem>>, vector<8x128xf32>,
    return
  }
  func.func @transform_0(%arg0: i32) -> (i32, i32) {
    %c0_i32 = arith.constant 0 : i32
    %c0_i32_0 = arith.constant 0 : i32
    return %arg0, %c0_i32 : i32, i32
  }
  func.func @transform_1(%arg0: i32) -> (i32, i32) {
    %c0_i32 = arith.constant 0 : i32
    %c0_i32_0 = arith.constant 0 : i32
    %c0_i32_1 = arith.constant 0 : i32
    return %c0_i32, %c0_i32_0 : i32, i32
  }
  func.func @transform_2(%arg0: i32) -> (i32, i32) {
    %c0_i32 = arith.constant 0 : i32
    %c0_i32_0 = arith.constant 0 : i32
    %c0_i32_1 = arith.constant 0 : i32
    return %c0_i32, %c0_i32_0 : i32, i32
  }
  func.func @transform_3(%arg0: i32) -> (i32, i32, i32) {
    %c0_i32 = arith.constant 0 : i32
    %c0_i32_0 = arith.constant 0 : i32
    %c0_i32_1 = arith.constant 0 : i32
    %c0_i32_2 = arith.constant 0 : i32
    return %c0_i32, %c0_i32_0, %c0_i32_1 : i32, i32, i32
  }
  func.func @transform_4(%arg0: i32) -> (i32, i32, i32) {
    %c0_i32 = arith.constant 0 : i32
    %c0_i32_0 = arith.constant 0 : i32
    %c0_i32_1 = arith.constant 0 : i32
    %c0_i32_2 = arith.constant 0 : i32
    return %c0_i32, %c0_i32_0, %c0_i32_1 : i32, i32, i32
  }
  func.func @transform_5(%arg0: i32) -> (i32, i32) {
    %c0_i32 = arith.constant 0 : i32
    %c0_i32_0 = arith.constant 0 : i32
    %c0_i32_1 = arith.constant 0 : i32
    return %c0_i32, %c0_i32_0 : i32, i32
  }
  func.func @transform_6(%arg0: i32) -> (i32, i32) {
    %c0_i32 = arith.constant 0 : i32
    %c0_i32_0 = arith.constant 0 : i32
    %c0_i32_1 = arith.constant 0 : i32
    return %c0_i32, %c0_i32_0 : i32, i32
  }
  func.func @transform_7(%arg0: i32) -> (i32, i32) {
    %c0_i32 = arith.constant 0 : i32
    %c0_i32_0 = arith.constant 0 : i32
    return %arg0, %c0_i32 : i32, i32
  }
}

</mosaic_0001>

<llo_original>
// kernel: tpu_custom_call.1
$region0: #{tpu_custom_call.1}
  #allocation0 [shape = 'u32[]', space=smem, size = 0x4, offset = 0x4, fixed_abs, tag = 'smem constant byte address 0x4 - core index']
  #allocation1 [shape = 'u32[72,128]{1,0:T(1,128)}', space=vmem, size = 0x9000, scoped, tag = 'internal scratch']
  %s0 = inlined_call_operand.hbm [shape: bf16[8,128], index: 0, kind: input, shape index: {}]
  %s1 = inlined_call_operand.hbm [shape: bf16[128,128], index: 1, kind: input, shape index: {}]
  %s2 = inlined_call_operand.vmem [shape: f32[1,128], index: 2, kind: input, shape index: {}]
  %s3 = inlined_call_operand.hbm [shape: bf16[1,128,128], index: 3, kind: input, shape index: {}]
  %s4 = inlined_call_operand.vmem [shape: f32[1,1,128], index: 4, kind: input, shape index: {}]
  %s5 = inlined_call_operand.hbm [shape: bf16[128,128], index: 5, kind: input, shape index: {}]
  %s6 = inlined_call_operand.vmem [shape: f32[1,128], index: 6, kind: input, shape index: {}]
  %s7 = inlined_call_operand.hbm [shape: f32[8,128], index: 7, kind: output, shape index: {}]
  %s8 = sld [smem:[#allocation0]]
  $region54: #{tpu_custom_call.1} parent=0
    _
  %s10 = ssub.s32 1, %s8
  %s11 = scalar_select 0, %s10, %s8
  $region1: #{tpu_custom_call.1} parent=0
    #allocation2 [shape = 'u8[2048]{0}', space=vmem, size = 0x800, scoped, tag = 'input window, operand 0, single buffered']
    #allocation3 [shape = 's32[1]{0}', space=sflag, size = 0x4, scoped, tag = 'scoped memory for tpu_custom_call.1']
    #allocation4 [shape = 's32[1]{0}', space=sflag, size = 0x4, scoped, tag = 'scoped memory for tpu_custom_call.1']
    #allocation5 [shape = 'u8[32768]{0}', space=vmem, size = 0x8000, scoped, tag = 'input window, operand 1, single buffered']
    #allocation6 [shape = 's32[1]{0}', space=sflag, size = 0x4, scoped, tag = 'scoped memory for tpu_custom_call.1']
    #allocation7 [shape = 'u8[32768]{0}', space=vmem, size = 0x8000, scoped, tag = 'input window, operand 3, single buffered']
    #allocation8 [shape = 'u8[32768]{0}', space=vmem, size = 0x8000, scoped, tag = 'input window, operand 5, single buffered']
    #allocation9 [shape = 's32[1]{0}', space=sflag, size = 0x4, scoped, tag = 'scoped memory for tpu_custom_call.1']
    #allocation10 [shape = 'u8[4096]{0}', space=vmem, size = 0x1000, scoped, tag = 'output window, operand 0, single buffered']
    %12 = vsyncpa [#allocation3], 0
    %13 = vsyncpa [#allocation6], 0
    %14 = vsyncpa [#allocation9], 0
    %15 = vsyncpa [#allocation4], 0
    // Predicated region
    $region2: #{tpu_custom_call.1} parent=1 // pred_check
      _
    $region3: #{tpu_custom_call.1} parent=1 // pred_check_branch
      %17 = sbr.rel (0) target = $region5
    $region4: #{tpu_custom_call.1} parent=1 // pred_region
      %19 = vsyncadd [#allocation3], 0
      %s21 = sshll.u32 %s0, 4
      %s22 = int_to_ptr.hbm [resolvable:$true] %s21
      %s23 = sshll.u32 [#allocation2], 4
      %s24 = int_to_ptr.vmem [resolvable:$true] %s23
      %26 = dma.hbm_to_vmem [thread:$0]  %s22, 64, %s24, [#allocation3]
    $region5: #{tpu_custom_call.1} parent=1 // pred_fallthru
      _
    // Predicated region
    $region6: #{tpu_custom_call.1} parent=1 // pred_check
      _
    $region7: #{tpu_custom_call.1} parent=1 // pred_check_branch
      %28 = sbr.rel (0) target = $region9
    $region8: #{tpu_custom_call.1} parent=1 // pred_region
      %30 = vsyncadd [#allocation6], 0
      %s31 = sshll.u32 %s1, 4
      %s32 = int_to_ptr.hbm [resolvable:$true] %s31
      %s33 = sshll.u32 [#allocation5], 4
      %s34 = int_to_ptr.vmem [resolvable:$true] %s33
      %39 = dma.hbm_to_vmem [thread:$0]  %s32, 1024, %s34, [#allocation6], 64, 64, 4
    $region9: #{tpu_custom_call.1} parent=1 // pred_fallthru
      _
    // Predicated region
    $region10: #{tpu_custom_call.1} parent=1 // pred_check
      _
    $region11: #{tpu_custom_call.1} parent=1 // pred_check_branch
      %41 = sbr.rel (0) target = $region13
    $region12: #{tpu_custom_call.1} parent=1 // pred_region
      _
    $region13: #{tpu_custom_call.1} parent=1 // pred_fallthru
      _
    // Predicated region
    $region14: #{tpu_custom_call.1} parent=1 // pred_check
      _
    $region15: #{tpu_custom_call.1} parent=1 // pred_check_branch
      %43 = sbr.rel (0) target = $region17
    $region16: #{tpu_custom_call.1} parent=1 // pred_region
      %45 = vsyncadd [#allocation6], 0
      %s46 = sshll.u32 %s3, 4
      %s47 = int_to_ptr.hbm [resolvable:$true] %s46
      %s48 = sshll.u32 [#allocation7], 4
      %s49 = int_to_ptr.vmem [resolvable:$true] %s48
      %54 = dma.hbm_to_vmem [thread:$0]  %s47, 1024, %s49, [#allocation6], 64, 64, 4
    $region17: #{tpu_custom_call.1} parent=1 // pred_fallthru
      _
    // Predicated region
    $region18: #{tpu_custom_call.1} parent=1 // pred_check
      _
    $region19: #{tpu_custom_call.1} parent=1 // pred_check_branch
      %56 = sbr.rel (0) target = $region21
    $region20: #{tpu_custom_call.1} parent=1 // pred_region
      _
    $region21: #{tpu_custom_call.1} parent=1 // pred_fallthru
      _
    // Predicated region
    $region22: #{tpu_custom_call.1} parent=1 // pred_check
      _
    $region23: #{tpu_custom_call.1} parent=1 // pred_check_branch
      %58 = sbr.rel (0) target = $region25
    $region24: #{tpu_custom_call.1} parent=1 // pred_region
      %60 = vsyncadd [#allocation9], 0
      %s61 = sshll.u32 %s5, 4
      %s62 = int_to_ptr.hbm [resolvable:$true] %s61
      %s63 = sshll.u32 [#allocation8], 4
      %s64 = int_to_ptr.vmem [resolvable:$true] %s63
      %69 = dma.hbm_to_vmem [thread:$0]  %s62, 1024, %s64, [#allocation9], 64, 64, 4
    $region25: #{tpu_custom_call.1} parent=1 // pred_fallthru
      _
    // Predicated region
    $region26: #{tpu_custom_call.1} parent=1 // pred_check
      _
    $region27: #{tpu_custom_call.1} parent=1 // pred_check_branch
      %71 = sbr.rel (0) target = $region29
    $region28: #{tpu_custom_call.1} parent=1 // pred_region
      _
    $region29: #{tpu_custom_call.1} parent=1 // pred_fallthru
      _
    // Predicated region
    $region30: #{tpu_custom_call.1} parent=1 // pred_check
      _
    $region31: #{tpu_custom_call.1} parent=1 // pred_check_branch
      %73 = sbr.rel (0) target = $region33
    $region32: #{tpu_custom_call.1} parent=1 // pred_region
      %75 = dma.done [#allocation3], 64
    $region33: #{tpu_custom_call.1} parent=1 // pred_fallthru
      _
    // Predicated region
    $region34: #{tpu_custom_call.1} parent=1 // pred_check
      _
    $region35: #{tpu_custom_call.1} parent=1 // pred_check_branch
      %77 = sbr.rel (0) target = $region37
    $region36: #{tpu_custom_call.1} parent=1 // pred_region
      %79 = dma.done [#allocation6], 1024
    $region37: #{tpu_custom_call.1} parent=1 // pred_fallthru
      _
    // Predicated region
    $region38: #{tpu_custom_call.1} parent=1 // pred_check
      _
    $region39: #{tpu_custom_call.1} parent=1 // pred_check_branch
      %81 = sbr.rel (0) target = $region41
    $region40: #{tpu_custom_call.1} parent=1 // pred_region
      %83 = dma.done [#allocation6], 1024
    $region41: #{tpu_custom_call.1} parent=1 // pred_fallthru
      _
    // Predicated region
    $region42: #{tpu_custom_call.1} parent=1 // pred_check
      _
    $region43: #{tpu_custom_call.1} parent=1 // pred_check_branch
      %85 = sbr.rel (0) target = $region45
    $region44: #{tpu_custom_call.1} parent=1 // pred_region
      %87 = dma.done [#allocation9], 1024
    $region45: #{tpu_custom_call.1} parent=1 // pred_fallthru
      _
    %v88 = vld [vmem:[#allocation2] sm:$0xf]
    %v89 = vld [vmem:[#allocation5] sm:$0xf]
    %v90 = vld [vmem:[#allocation5 + $0x4] sm:$0xf]
    %v91 = vld [vmem:[#allocation5 + $0x8] sm:$0xf]
    %v92 = vld [vmem:[#allocation5 + $0xc] sm:$0xf]
    %v93 = vld [vmem:[#allocation5 + $0x10] sm:$0xf]
    %v94 = vld [vmem:[#allocation5 + $0x14] sm:$0xf]
    %v95 = vld [vmem:[#allocation5 + $0x18] sm:$0xf]
    %v96 = vld [vmem:[#allocation5 + $0x1c] sm:$0xf]
    %v97 = vld [vmem:[#allocation5 + $0x20] sm:$0xf]
    %v98 = vld [vmem:[#allocation5 + $0x24] sm:$0xf]
    %v99 = vld [vmem:[#allocation5 + $0x28] sm:$0xf]
    %v100 = vld [vmem:[#allocation5 + $0x2c] sm:$0xf]
    %v101 = vld [vmem:[#allocation5 + $0x30] sm:$0xf]
    %v102 = vld [vmem:[#allocation5 + $0x34] sm:$0xf]
    %v103 = vld [vmem:[#allocation5 + $0x38] sm:$0xf]
    %v104 = vld [vmem:[#allocation5 + $0x3c] sm:$0xf]
    %v105 = vld [vmem:[%s2] sm:$0x1]
    %v107 = vperm.slane %v105, 0
    %v125 = vunpack.c.l.b16 %v89
    %v126 = vunpack.c.l.b16 %v90
    %v127 = vunpack.c.l.b16 %v91
    %v128 = vunpack.c.l.b16 %v92
    %v129 = vunpack.c.l.b16 %v93
    %v130 = vunpack.c.l.b16 %v94
    %v131 = vunpack.c.l.b16 %v95
    %v132 = vunpack.c.l.b16 %v96
    %v133 = vunpack.c.l.b16 %v97
    %v134 = vunpack.c.l.b16 %v98
    %v135 = vunpack.c.l.b16 %v99
    %v136 = vunpack.c.l.b16 %v100
    %v137 = vunpack.c.l.b16 %v101
    %v138 = vunpack.c.l.b16 %v102
    %v139 = vunpack.c.l.b16 %v103
    %v140 = vunpack.c.l.b16 %v104
    %v141 = vpack.c.b16 %v126, %v125
    %v142 = vpack.c.b16 %v128, %v127
    %v143 = vpack.c.b16 %v130, %v129
    %v144 = vpack.c.b16 %v132, %v131
    %v145 = vpack.c.b16 %v134, %v133
    %v146 = vpack.c.b16 %v136, %v135
    %v147 = vpack.c.b16 %v138, %v137
    %v148 = vpack.c.b16 %v140, %v139
    %157 = vmatpush.bf16.msra.mxu0 %v148
    %158 = vmatpush.bf16.msra.mxu0 %v147
    %159 = vmatpush.bf16.msra.mxu0 %v146
    %160 = vmatpush.bf16.msra.mxu0 %v145
    %161 = vmatpush.bf16.msra.mxu0 %v144
    %162 = vmatpush.bf16.msra.mxu0 %v143
    %163 = vmatpush.bf16.msra.mxu0 %v142
    %164 = vmatpush.bf16.msra.mxu0 %v141
    %165 = vmatmul.bf16.gmra.mxu0 %v88
    %v166 = vpop.f32.mrf.mxu0
    %v167 = vadd.f32 %v107, %v166
    %v168 = vpop.f32.mrf.mxu0
    %169 = vdwg.mxu0
    %v170 = vmax.f32 %v167, 0.0
    %v171 = vld [vmem:[#allocation7] sm:$0xf]
    %v172 = vld [vmem:[#allocation7 + $0x4] sm:$0xf]
    %v173 = vld [vmem:[#allocation7 + $0x8] sm:$0xf]
    %v174 = vld [vmem:[#allocation7 + $0xc] sm:$0xf]
    %v175 = vld [vmem:[#allocation7 + $0x10] sm:$0xf]
    %v176 = vld [vmem:[#allocation7 + $0x14] sm:$0xf]
    %v177 = vld [vmem:[#allocation7 + $0x18] sm:$0xf]
    %v178 = vld [vmem:[#allocation7 + $0x1c] sm:$0xf]
    %v179 = vld [vmem:[#allocation7 + $0x20] sm:$0xf]
    %v180 = vld [vmem:[#allocation7 + $0x24] sm:$0xf]
    %v181 = vld [vmem:[#allocation7 + $0x28] sm:$0xf]
    %v182 = vld [vmem:[#allocation7 + $0x2c] sm:$0xf]
    %v183 = vld [vmem:[#allocation7 + $0x30] sm:$0xf]
    %v184 = vld [vmem:[#allocation7 + $0x34] sm:$0xf]
    %v185 = vld [vmem:[#allocation7 + $0x38] sm:$0xf]
    %v186 = vld [vmem:[#allocation7 + $0x3c] sm:$0xf]
    %v187 = vld [vmem:[%s4] sm:$0x1]
    %v188 = vpack.c.bf16 %v170, %v170
    %v190 = vperm.slane %v187, 0
    %v208 = vunpack.c.l.b16 %v171
    %v209 = vunpack.c.l.b16 %v172
    %v210 = vunpack.c.l.b16 %v173
    %v211 = vunpack.c.l.b16 %v174
    %v212 = vunpack.c.l.b16 %v175
    %v213 = vunpack.c.l.b16 %v176
    %v214 = vunpack.c.l.b16 %v177
    %v215 = vunpack.c.l.b16 %v178
    %v216 = vunpack.c.l.b16 %v179
    %v217 = vunpack.c.l.b16 %v180
    %v218 = vunpack.c.l.b16 %v181
    %v219 = vunpack.c.l.b16 %v182
    %v220 = vunpack.c.l.b16 %v183
    %v221 = vunpack.c.l.b16 %v184
    %v222 = vunpack.c.l.b16 %v185
    %v223 = vunpack.c.l.b16 %v186
    %v224 = vpack.c.b16 %v209, %v208
    %v225 = vpack.c.b16 %v211, %v210
    %v226 = vpack.c.b16 %v213, %v212
    %v227 = vpack.c.b16 %v215, %v214
    %v228 = vpack.c.b16 %v217, %v216
    %v229 = vpack.c.b16 %v219, %v218
    %v230 = vpack.c.b16 %v221, %v220
    %v231 = vpack.c.b16 %v223, %v222
    %240 = vmatpush.bf16.msra.mxu0 %v231
    %241 = vmatpush.bf16.msra.mxu0 %v230
    %242 = vmatpush.bf16.msra.mxu0 %v229
    %243 = vmatpush.bf16.msra.mxu0 %v228
    %244 = vmatpush.bf16.msra.mxu0 %v227
    %245 = vmatpush.bf16.msra.mxu0 %v226
    %246 = vmatpush.bf16.msra.mxu0 %v225
    %247 = vmatpush.bf16.msra.mxu0 %v224
    %248 = vmatmul.bf16.gmra.mxu0 %v188
    %v249 = vpop.f32.mrf.mxu0
    %v250 = vadd.f32 %v190, %v249
    %v251 = vpop.f32.mrf.mxu0
    %252 = vdwg.mxu0
    %v253 = vmax.f32 %v250, 0.0
    %v254 = vpack.c.bf16 %v253, %v253
    %v255 = vld [vmem:[#allocation8] sm:$0xf]
    %v256 = vld [vmem:[#allocation8 + $0x4] sm:$0xf]
    %v257 = vld [vmem:[#allocation8 + $0x8] sm:$0xf]
    %v258 = vld [vmem:[#allocation8 + $0xc] sm:$0xf]
    %v259 = vld [vmem:[#allocation8 + $0x10] sm:$0xf]
    %v260 = vld [vmem:[#allocation8 + $0x14] sm:$0xf]
    %v261 = vld [vmem:[#allocation8 + $0x18] sm:$0xf]
    %v262 = vld [vmem:[#allocation8 + $0x1c] sm:$0xf]
    %v263 = vld [vmem:[#allocation8 + $0x20] sm:$0xf]
    %v264 = vld [vmem:[#allocation8 + $0x24] sm:$0xf]
    %v265 = vld [vmem:[#allocation8 + $0x28] sm:$0xf]
    %v266 = vld [vmem:[#allocation8 + $0x2c] sm:$0xf]
    %v267 = vld [vmem:[#allocation8 + $0x30] sm:$0xf]
    %v268 = vld [vmem:[#allocation8 + $0x34] sm:$0xf]
    %v269 = vld [vmem:[#allocation8 + $0x38] sm:$0xf]
    %v270 = vld [vmem:[#allocation8 + $0x3c] sm:$0xf]
    %v271 = vld [vmem:[%s6] sm:$0x1]
    %v273 = vperm.slane %v271, 0
    %v291 = vunpack.c.l.b16 %v255
    %v292 = vunpack.c.l.b16 %v256
    %v293 = vunpack.c.l.b16 %v257
    %v294 = vunpack.c.l.b16 %v258
    %v295 = vunpack.c.l.b16 %v259
    %v296 = vunpack.c.l.b16 %v260
    %v297 = vunpack.c.l.b16 %v261
    %v298 = vunpack.c.l.b16 %v262
    %v299 = vunpack.c.l.b16 %v263
    %v300 = vunpack.c.l.b16 %v264
    %v301 = vunpack.c.l.b16 %v265
    %v302 = vunpack.c.l.b16 %v266
    %v303 = vunpack.c.l.b16 %v267
    %v304 = vunpack.c.l.b16 %v268
    %v305 = vunpack.c.l.b16 %v269
    %v306 = vunpack.c.l.b16 %v270
    %v307 = vpack.c.b16 %v292, %v291
    %v308 = vpack.c.b16 %v294, %v293
    %v309 = vpack.c.b16 %v296, %v295
    %v310 = vpack.c.b16 %v298, %v297
    %v311 = vpack.c.b16 %v300, %v299
    %v312 = vpack.c.b16 %v302, %v301
    %v313 = vpack.c.b16 %v304, %v303
    %v314 = vpack.c.b16 %v306, %v305
    %323 = vmatpush.bf16.msra.mxu0 %v314
    %324 = vmatpush.bf16.msra.mxu0 %v313
    %325 = vmatpush.bf16.msra.mxu0 %v312
    %326 = vmatpush.bf16.msra.mxu0 %v311
    %327 = vmatpush.bf16.msra.mxu0 %v310
    %328 = vmatpush.bf16.msra.mxu0 %v309
    %329 = vmatpush.bf16.msra.mxu0 %v308
    %330 = vmatpush.bf16.msra.mxu0 %v307
    %331 = vmatmul.bf16.gmra.mxu0 %v254
    %v332 = vpop.f32.mrf.mxu0
    %v333 = vadd.f32 %v273, %v332
    %v334 = vpop.f32.mrf.mxu0
    %335 = vdwg.mxu0
    %336 = vst [vmem:[#allocation10] sm:$0xff] %v333
    // Predicated region
    $region46: #{tpu_custom_call.1} parent=1 // pred_check
      _
    $region47: #{tpu_custom_call.1} parent=1 // pred_check_branch
      %338 = sbr.rel (0) target = $region49
    $region48: #{tpu_custom_call.1} parent=1 // pred_region
      %340 = vsyncadd [#allocation4], 0
      %s342 = sshll.u32 [#allocation10], 4
      %s343 = int_to_ptr.vmem [resolvable:$true] %s342
      %s344 = sshll.u32 %s7, 4
      %s345 = int_to_ptr.hbm [resolvable:$true] %s344
      %347 = dma.vmem_to_hbm [thread:$0]  %s343, 128, %s345, [#allocation4]
    $region49: #{tpu_custom_call.1} parent=1 // pred_fallthru
      _
    // Predicated region
    $region50: #{tpu_custom_call.1} parent=1 // pred_check
      _
    $region51: #{tpu_custom_call.1} parent=1 // pred_check_branch
      %349 = sbr.rel (0) target = $region53
    $region52: #{tpu_custom_call.1} parent=1 // pred_region
      %351 = dma.done [#allocation4], 128
    $region53: #{tpu_custom_call.1} parent=1 // pred_fallthru
      _
    %352 = vsyncpa [#allocation3], 1
    %353 = vsyncpa [#allocation6], 1
    %354 = vsyncpa [#allocation9], 1
    %355 = vsyncpa [#allocation4], 1

// kernel: tpu_custom_call.1
$region0: #{tpu_custom_call.1}
  #allocation0 [shape = 'u32[]', space=smem, size = 0x4, offset = 0x4, fixed_abs, tag = 'smem constant byte address 0x4 - core index']
  #allocation1 [shape = 'u32[72,128]{1,0:T(1,128)}', space=vmem, size = 0x9000, scoped, tag = 'internal scratch']
  %s0 = inlined_call_operand.hbm [shape: bf16[8,128], index: 0, kind: input, shape index: {}]
  %s1 = inlined_call_operand.hbm [shape: bf16[128,128], index: 1, kind: input, shape index: {}]
  %s2 = inlined_call_operand.vmem [shape: f32[1,128], index: 2, kind: input, shape index: {}]
  %s3 = inlined_call_operand.hbm [shape: bf16[1,128,128], index: 3, kind: input, shape index: {}]
  %s4 = inlined_call_operand.vmem [shape: f32[1,1,128], index: 4, kind: input, shape index: {}]
  %s5 = inlined_call_operand.hbm [shape: bf16[128,128], index: 5, kind: input, shape index: {}]
  %s6 = inlined_call_operand.vmem [shape: f32[1,128], index: 6, kind: input, shape index: {}]
  %s7 = inlined_call_operand.hbm [shape: f32[8,128], index: 7, kind: output, shape index: {}]
  %s8 = sld [smem:[#allocation0]]
  $region54: #{tpu_custom_call.1} parent=0
    _
  %s10 = ssub.s32 1, %s8
  %s11 = scalar_select 0, %s10, %s8
  $region1: #{tpu_custom_call.1} parent=0
    #allocation2 [shape = 'u8[2048]{0}', space=vmem, size = 0x800, scoped, tag = 'input window, operand 0, single buffered']
    #allocation3 [shape = 's32[1]{0}', space=sflag, size = 0x4, scoped, tag = 'scoped memory for tpu_custom_call.1']
    #allocation4 [shape = 's32[1]{0}', space=sflag, size = 0x4, scoped, tag = 'scoped memory for tpu_custom_call.1']
    #allocation5 [shape = 'u8[32768]{0}', space=vmem, size = 0x8000, scoped, tag = 'input window, operand 1, single buffered']
    #allocation6 [shape = 's32[1]{0}', space=sflag, size = 0x4, scoped, tag = 'scoped memory for tpu_custom_call.1']
    #allocation7 [shape = 'u8[32768]{0}', space=vmem, size = 0x8000, scoped, tag = 'input window, operand 3, single buffered']
    #allocation8 [shape = 'u8[32768]{0}', space=vmem, size = 0x8000, scoped, tag = 'input window, operand 5, single buffered']
    #allocation9 [shape = 's32[1]{0}', space=sflag, size = 0x4, scoped, tag = 'scoped memory for tpu_custom_call.1']
    #allocation10 [shape = 'u8[4096]{0}', space=vmem, size = 0x1000, scoped, tag = 'output window, operand 0, single buffered']
    %12 = vsyncpa [#allocation3], 0
    %13 = vsyncpa [#allocation6], 0
    %14 = vsyncpa [#allocation9], 0
    %15 = vsyncpa [#allocation4], 0
    // Predicated region
    $region2: #{tpu_custom_call.1} parent=1 // pred_check
      _
    $region3: #{tpu_custom_call.1} parent=1 // pred_check_branch
      %17 = sbr.rel (0) target = $region5
    $region4: #{tpu_custom_call.1} parent=1 // pred_region
      %19 = vsyncadd [#allocation3], 0
      %s21 = sshll.u32 %s0, 4
      %s22 = int_to_ptr.hbm [resolvable:$true] %s21
      %s23 = sshll.u32 [#allocation2], 4
      %s24 = int_to_ptr.vmem [resolvable:$true] %s23
      %26 = dma.hbm_to_vmem [thread:$0]  %s22, 64, %s24, [#allocation3]
    $region5: #{tpu_custom_call.1} parent=1 // pred_fallthru
      _
    // Predicated region
    $region6: #{tpu_custom_call.1} parent=1 // pred_check
      _
    $region7: #{tpu_custom_call.1} parent=1 // pred_check_branch
      %28 = sbr.rel (0) target = $region9
    $region8: #{tpu_custom_call.1} parent=1 // pred_region
      %30 = vsyncadd [#allocation6], 0
      %s31 = sshll.u32 %s1, 4
      %s32 = int_to_ptr.hbm [resolvable:$true] %s31
      %s33 = sshll.u32 [#allocation5], 4
      %s34 = int_to_ptr.vmem [resolvable:$true] %s33
      %39 = dma.hbm_to_vmem [thread:$0]  %s32, 1024, %s34, [#allocation6], 64, 64, 4
    $region9: #{tpu_custom_call.1} parent=1 // pred_fallthru
      _
    // Predicated region
    $region10: #{tpu_custom_call.1} parent=1 // pred_check
      _
    $region11: #{tpu_custom_call.1} parent=1 // pred_check_branch
      %41 = sbr.rel (0) target = $region13
    $region12: #{tpu_custom_call.1} parent=1 // pred_region
      _
    $region13: #{tpu_custom_call.1} parent=1 // pred_fallthru
      _
    // Predicated region
    $region14: #{tpu_custom_call.1} parent=1 // pred_check
      _
    $region15: #{tpu_custom_call.1} parent=1 // pred_check_branch
      %43 = sbr.rel (0) target = $region17
    $region16: #{tpu_custom_call.1} parent=1 // pred_region
      %45 = vsyncadd [#allocation6], 0
      %s46 = sshll.u32 %s3, 4
      %s47 = int_to_ptr.hbm [resolvable:$true] %s46
      %s48 = sshll.u32 [#allocation7], 4
      %s49 = int_to_ptr.vmem [resolvable:$true] %s48
      %54 = dma.hbm_to_vmem [thread:$0]  %s47, 1024, %s49, [#allocation6], 64, 64, 4
    $region17: #{tpu_custom_call.1} parent=1 // pred_fallthru
      _
    // Predicated region
    $region18: #{tpu_custom_call.1} parent=1 // pred_check
      _
    $region19: #{tpu_custom_call.1} parent=1 // pred_check_branch
      %56 = sbr.rel (0) target = $region21
    $region20: #{tpu_custom_call.1} parent=1 // pred_region
      _
    $region21: #{tpu_custom_call.1} parent=1 // pred_fallthru
      _
    // Predicated region
    $region22: #{tpu_custom_call.1} parent=1 // pred_check
      _
    $region23: #{tpu_custom_call.1} parent=1 // pred_check_branch
      %58 = sbr.rel (0) target = $region25
    $region24: #{tpu_custom_call.1} parent=1 // pred_region
      %60 = vsyncadd [#allocation9], 0
      %s61 = sshll.u32 %s5, 4
      %s62 = int_to_ptr.hbm [resolvable:$true] %s61
      %s63 = sshll.u32 [#allocation8], 4
      %s64 = int_to_ptr.vmem [resolvable:$true] %s63
      %69 = dma.hbm_to_vmem [thread:$0]  %s62, 1024, %s64, [#allocation9], 64, 64, 4
    $region25: #{tpu_custom_call.1} parent=1 // pred_fallthru
      _
    // Predicated region
    $region26: #{tpu_custom_call.1} parent=1 // pred_check
      _
    $region27: #{tpu_custom_call.1} parent=1 // pred_check_branch
      %71 = sbr.rel (0) target = $region29
    $region28: #{tpu_custom_call.1} parent=1 // pred_region
      _
    $region29: #{tpu_custom_call.1} parent=1 // pred_fallthru
      _
    // Predicated region
    $region30: #{tpu_custom_call.1} parent=1 // pred_check
      _
    $region31: #{tpu_custom_call.1} parent=1 // pred_check_branch
      %73 = sbr.rel (0) target = $region33
    $region32: #{tpu_custom_call.1} parent=1 // pred_region
      %75 = dma.done [#allocation3], 64
    $region33: #{tpu_custom_call.1} parent=1 // pred_fallthru
      _
    // Predicated region
    $region34: #{tpu_custom_call.1} parent=1 // pred_check
      _
    $region35: #{tpu_custom_call.1} parent=1 // pred_check_branch
      %77 = sbr.rel (0) target = $region37
    $region36: #{tpu_custom_call.1} parent=1 // pred_region
      %79 = dma.done [#allocation6], 1024
    $region37: #{tpu_custom_call.1} parent=1 // pred_fallthru
      _
    // Predicated region
    $region38: #{tpu_custom_call.1} parent=1 // pred_check
      _
    $region39: #{tpu_custom_call.1} parent=1 // pred_check_branch
      %81 = sbr.rel (0) target = $region41
    $region40: #{tpu_custom_call.1} parent=1 // pred_region
      %83 = dma.done [#allocation6], 1024
    $region41: #{tpu_custom_call.1} parent=1 // pred_fallthru
      _
    // Predicated region
    $region42: #{tpu_custom_call.1} parent=1 // pred_check
      _
    $region43: #{tpu_custom_call.1} parent=1 // pred_check_branch
      %85 = sbr.rel (0) target = $region45
    $region44: #{tpu_custom_call.1} parent=1 // pred_region
      %87 = dma.done [#allocation9], 1024
    $region45: #{tpu_custom_call.1} parent=1 // pred_fallthru
      _
    %v88 = vld [vmem:[#allocation2] sm:$0xf]
    %v89 = vld [vmem:[#allocation5] sm:$0xf]
    %v90 = vld [vmem:[#allocation5 + $0x4] sm:$0xf]
    %v91 = vld [vmem:[#allocation5 + $0x8] sm:$0xf]
    %v92 = vld [vmem:[#allocation5 + $0xc] sm:$0xf]
    %v93 = vld [vmem:[#allocation5 + $0x10] sm:$0xf]
    %v94 = vld [vmem:[#allocation5 + $0x14] sm:$0xf]
    %v95 = vld [vmem:[#allocation5 + $0x18] sm:$0xf]
    %v96 = vld [vmem:[#allocation5 + $0x1c] sm:$0xf]
    %v97 = vld [vmem:[#allocation5 + $0x20] sm:$0xf]
    %v98 = vld [vmem:[#allocation5 + $0x24] sm:$0xf]
    %v99 = vld [vmem:[#allocation5 + $0x28] sm:$0xf]
    %v100 = vld [vmem:[#allocation5 + $0x2c] sm:$0xf]
    %v101 = vld [vmem:[#allocation5 + $0x30] sm:$0xf]
    %v102 = vld [vmem:[#allocation5 + $0x34] sm:$0xf]
    %v103 = vld [vmem:[#allocation5 + $0x38] sm:$0xf]
    %v104 = vld [vmem:[#allocation5 + $0x3c] sm:$0xf]
    %v105 = vld [vmem:[%s2] sm:$0x1]
    %v107 = vperm.slane %v105, 0
    %v125 = vunpack.c.l.b16 %v89
    %v126 = vunpack.c.l.b16 %v90
    %v127 = vunpack.c.l.b16 %v91
    %v128 = vunpack.c.l.b16 %v92
    %v129 = vunpack.c.l.b16 %v93
    %v130 = vunpack.c.l.b16 %v94
    %v131 = vunpack.c.l.b16 %v95
    %v132 = vunpack.c.l.b16 %v96
    %v133 = vunpack.c.l.b16 %v97
    %v134 = vunpack.c.l.b16 %v98
    %v135 = vunpack.c.l.b16 %v99
    %v136 = vunpack.c.l.b16 %v100
    %v137 = vunpack.c.l.b16 %v101
    %v138 = vunpack.c.l.b16 %v102
    %v139 = vunpack.c.l.b16 %v103
    %v140 = vunpack.c.l.b16 %v104
    %v141 = vpack.c.b16 %v126, %v125
    %v142 = vpack.c.b16 %v128, %v127
    %v143 = vpack.c.b16 %v130, %v129
    %v144 = vpack.c.b16 %v132, %v131
    %v145 = vpack.c.b16 %v134, %v133
    %v146 = vpack.c.b16 %v136, %v135
    %v147 = vpack.c.b16 %v138, %v137
    %v148 = vpack.c.b16 %v140, %v139
    %157 = vmatpush.bf16.msra.mxu0 %v148
    %158 = vmatpush.bf16.msra.mxu0 %v147
    %159 = vmatpush.bf16.msra.mxu0 %v146
    %160 = vmatpush.bf16.msra.mxu0 %v145
    %161 = vmatpush.bf16.msra.mxu0 %v144
    %162 = vmatpush.bf16.msra.mxu0 %v143
    %163 = vmatpush.bf16.msra.mxu0 %v142
    %164 = vmatpush.bf16.msra.mxu0 %v141
    %165 = vmatmul.bf16.gmra.mxu0 %v88
    %v166 = vpop.f32.mrf.mxu0
    %v167 = vadd.f32 %v107, %v166
    %v168 = vpop.f32.mrf.mxu0
    %169 = vdwg.mxu0
    %v170 = vmax.f32 %v167, 0.0
    %v171 = vld [vmem:[#allocation7] sm:$0xf]
    %v172 = vld [vmem:[#allocation7 + $0x4] sm:$0xf]
    %v173 = vld [vmem:[#allocation7 + $0x8] sm:$0xf]
    %v174 = vld [vmem:[#allocation7 + $0xc] sm:$0xf]
    %v175 = vld [vmem:[#allocation7 + $0x10] sm:$0xf]
    %v176 = vld [vmem:[#allocation7 + $0x14] sm:$0xf]
    %v177 = vld [vmem:[#allocation7 + $0x18] sm:$0xf]
    %v178 = vld [vmem:[#allocation7 + $0x1c] sm:$0xf]
    %v179 = vld [vmem:[#allocation7 + $0x20] sm:$0xf]
    %v180 = vld [vmem:[#allocation7 + $0x24] sm:$0xf]
    %v181 = vld [vmem:[#allocation7 + $0x28] sm:$0xf]
    %v182 = vld [vmem:[#allocation7 + $0x2c] sm:$0xf]
    %v183 = vld [vmem:[#allocation7 + $0x30] sm:$0xf]
    %v184 = vld [vmem:[#allocation7 + $0x34] sm:$0xf]
    %v185 = vld [vmem:[#allocation7 + $0x38] sm:$0xf]
    %v186 = vld [vmem:[#allocation7 + $0x3c] sm:$0xf]
    %v187 = vld [vmem:[%s4] sm:$0x1]
    %v188 = vpack.c.bf16 %v170, %v170
    %v190 = vperm.slane %v187, 0
    %v208 = vunpack.c.l.b16 %v171
    %v209 = vunpack.c.l.b16 %v172
    %v210 = vunpack.c.l.b16 %v173
    %v211 = vunpack.c.l.b16 %v174
    %v212 = vunpack.c.l.b16 %v175
    %v213 = vunpack.c.l.b16 %v176
    %v214 = vunpack.c.l.b16 %v177
    %v215 = vunpack.c.l.b16 %v178
    %v216 = vunpack.c.l.b16 %v179
    %v217 = vunpack.c.l.b16 %v180
    %v218 = vunpack.c.l.b16 %v181
    %v219 = vunpack.c.l.b16 %v182
    %v220 = vunpack.c.l.b16 %v183
    %v221 = vunpack.c.l.b16 %v184
    %v222 = vunpack.c.l.b16 %v185
    %v223 = vunpack.c.l.b16 %v186
    %v224 = vpack.c.b16 %v209, %v208
    %v225 = vpack.c.b16 %v211, %v210
    %v226 = vpack.c.b16 %v213, %v212
    %v227 = vpack.c.b16 %v215, %v214
    %v228 = vpack.c.b16 %v217, %v216
    %v229 = vpack.c.b16 %v219, %v218
    %v230 = vpack.c.b16 %v221, %v220
    %v231 = vpack.c.b16 %v223, %v222
    %240 = vmatpush.bf16.msra.mxu0 %v231
    %241 = vmatpush.bf16.msra.mxu0 %v230
    %242 = vmatpush.bf16.msra.mxu0 %v229
    %243 = vmatpush.bf16.msra.mxu0 %v228
    %244 = vmatpush.bf16.msra.mxu0 %v227
    %245 = vmatpush.bf16.msra.mxu0 %v226
    %246 = vmatpush.bf16.msra.mxu0 %v225
    %247 = vmatpush.bf16.msra.mxu0 %v224
    %248 = vmatmul.bf16.gmra.mxu0 %v188
    %v249 = vpop.f32.mrf.mxu0
    %v250 = vadd.f32 %v190, %v249
    %v251 = vpop.f32.mrf.mxu0
    %252 = vdwg.mxu0
    %v253 = vmax.f32 %v250, 0.0
    %v254 = vpack.c.bf16 %v253, %v253
    %v255 = vld [vmem:[#allocation8] sm:$0xf]
    %v256 = vld [vmem:[#allocation8 + $0x4] sm:$0xf]
    %v257 = vld [vmem:[#allocation8 + $0x8] sm:$0xf]
    %v258 = vld [vmem:[#allocation8 + $0xc] sm:$0xf]
    %v259 = vld [vmem:[#allocation8 + $0x10] sm:$0xf]
    %v260 = vld [vmem:[#allocation8 + $0x14] sm:$0xf]
    %v261 = vld [vmem:[#allocation8 + $0x18] sm:$0xf]
    %v262 = vld [vmem:[#allocation8 + $0x1c] sm:$0xf]
    %v263 = vld [vmem:[#allocation8 + $0x20] sm:$0xf]
    %v264 = vld [vmem:[#allocation8 + $0x24] sm:$0xf]
    %v265 = vld [vmem:[#allocation8 + $0x28] sm:$0xf]
    %v266 = vld [vmem:[#allocation8 + $0x2c] sm:$0xf]
    %v267 = vld [vmem:[#allocation8 + $0x30] sm:$0xf]
    %v268 = vld [vmem:[#allocation8 + $0x34] sm:$0xf]
    %v269 = vld [vmem:[#allocation8 + $0x38] sm:$0xf]
    %v270 = vld [vmem:[#allocation8 + $0x3c] sm:$0xf]
    %v271 = vld [vmem:[%s6] sm:$0x1]
    %v273 = vperm.slane %v271, 0
    %v291 = vunpack.c.l.b16 %v255
    %v292 = vunpack.c.l.b16 %v256
    %v293 = vunpack.c.l.b16 %v257
    %v294 = vunpack.c.l.b16 %v258
    %v295 = vunpack.c.l.b16 %v259
    %v296 = vunpack.c.l.b16 %v260
    %v297 = vunpack.c.l.b16 %v261
    %v298 = vunpack.c.l.b16 %v262
    %v299 = vunpack.c.l.b16 %v263
    %v300 = vunpack.c.l.b16 %v264
    %v301 = vunpack.c.l.b16 %v265
    %v302 = vunpack.c.l.b16 %v266
    %v303 = vunpack.c.l.b16 %v267
    %v304 = vunpack.c.l.b16 %v268
    %v305 = vunpack.c.l.b16 %v269
    %v306 = vunpack.c.l.b16 %v270
    %v307 = vpack.c.b16 %v292, %v291
    %v308 = vpack.c.b16 %v294, %v293
    %v309 = vpack.c.b16 %v296, %v295
    %v310 = vpack.c.b16 %v298, %v297
    %v311 = vpack.c.b16 %v300, %v299
    %v312 = vpack.c.b16 %v302, %v301
    %v313 = vpack.c.b16 %v304, %v303
    %v314 = vpack.c.b16 %v306, %v305
    %323 = vmatpush.bf16.msra.mxu0 %v314
    %324 = vmatpush.bf16.msra.mxu0 %v313
    %325 = vmatpush.bf16.msra.mxu0 %v312
    %326 = vmatpush.bf16.msra.mxu0 %v311
    %327 = vmatpush.bf16.msra.mxu0 %v310
    %328 = vmatpush.bf16.msra.mxu0 %v309
    %329 = vmatpush.bf16.msra.mxu0 %v308
    %330 = vmatpush.bf16.msra.mxu0 %v307
    %331 = vmatmul.bf16.gmra.mxu0 %v254
    %v332 = vpop.f32.mrf.mxu0
    %v333 = vadd.f32 %v273, %v332
    %v334 = vpop.f32.mrf.mxu0
    %335 = vdwg.mxu0
    %336 = vst [vmem:[#allocation10] sm:$0xff] %v333
    // Predicated region
    $region46: #{tpu_custom_call.1} parent=1 // pred_check
      _
    $region47: #{tpu_custom_call.1} parent=1 // pred_check_branch
      %338 = sbr.rel (0) target = $region49
    $region48: #{tpu_custom_call.1} parent=1 // pred_region
      %340 = vsyncadd [#allocation4], 0
      %s342 = sshll.u32 [#allocation10], 4
      %s343 = int_to_ptr.vmem [resolvable:$true] %s342
      %s344 = sshll.u32 %s7, 4
      %s345 = int_to_ptr.hbm [resolvable:$true] %s344
      %347 = dma.vmem_to_hbm [thread:$0]  %s343, 128, %s345, [#allocation4]
    $region49: #{tpu_custom_call.1} parent=1 // pred_fallthru
      _
    // Predicated region
    $region50: #{tpu_custom_call.1} parent=1 // pred_check
      _
    $region51: #{tpu_custom_call.1} parent=1 // pred_check_branch
      %349 = sbr.rel (0) target = $region53
    $region52: #{tpu_custom_call.1} parent=1 // pred_region
      %351 = dma.done [#allocation4], 128
    $region53: #{tpu_custom_call.1} parent=1 // pred_fallthru
      _
    %352 = vsyncpa [#allocation3], 1
    %353 = vsyncpa [#allocation6], 1
    %354 = vsyncpa [#allocation9], 1
    %355 = vsyncpa [#allocation4], 1

</llo_original>
